<compile_context>
chip_gen: v7x
topology: tpu7x:2x2x1
jax: 0.10.0
libtpu: 0.0.40
codegen_flags: <defaults>
</compile_context>

<pallas_src>
from functools import partial

import numpy as np
import jax
import jax.numpy as jnp
from jax.experimental import pallas as pl
from jax.experimental.pallas import tpu as pltpu

# ---- module hyperparameters (defaults from ODEFunc.__init__) ----
DIM = 4
EXT_DIM = 2
EXT2_DIM = 0            # default: no second external input
NEURAL_NUM = 400
DT = 12.5 / 1000
SAMPLE_P = 100
DISCARD = 1000
PI = float(np.arccos(0.0) * 2.0)
PERIOD = DT * SAMPLE_P                      # 1.25
SEQ_LEN = 6001 - DISCARD // SAMPLE_P        # 5991 (length of the 'rand_sin' sequence)

# ---- TPU-friendly padded sizes ----
H_PAD = 512                                 # hidden width 400 -> 512 (4 x 128 lanes)
OUT_PAD = 128                               # lane-dense output slab; cols 0:DIM = s0, col DIM = 1


# ---------------- external drive (plain JAX; also the reference implementation) ----------------
def get_ext_sin_ref(tt, sequence):
    """sequence[floor(tt/period)] * sin(2*pi/period * tt)   (matches module's get_ext_sin)."""
    num = jnp.floor(tt / PERIOD).astype(jnp.int32)
    resp = jnp.take(sequence, num, axis=0)
    return resp * jnp.sin((2.0 * PI / PERIOD) * tt)


def _ext_drive(tt, sequence):
    """Stack ext_i = get_ext_sin(tt + i*dt) along the last axis: (..., 1) -> (..., EXT_DIM)."""
    parts = [get_ext_sin_ref(tt + jnp.float32(i * DT), sequence) for i in range(EXT_DIM)]
    return jnp.concatenate(parts, axis=-1).astype(jnp.float32)


# ---------------- in-kernel math ----------------
def _forward_core(y, ext, w1s, w1e, b1, w2, b2, w3, b3c):
    """One ODEFunc.forward evaluation on padded operands.

    y   : (B, >=DIM)   cols 0:DIM = dynamical state (time column, if present, is unused here)
    ext : (B, EXT_DIM) precomputed external drive
    returns (B, OUT_PAD): cols 0:DIM = s0, col DIM = 1.0, rest = 0
    """
    # Layer 1: decompose cat(state, ext) @ W1 into a state-part matmul + rank-1 ext updates
    # (no in-kernel concatenation).  All f32.
    h = jnp.dot(y[:, :DIM], w1s, preferred_element_type=jnp.float32) + b1      # (B, H_PAD)
    for i in range(EXT_DIM):
        h = h + ext[:, i:i + 1] * w1e[i:i + 1, :]                              # (B,1)*(1,H_PAD)
    # Dropout(p=0) is the identity, so it is intentionally omitted.
    h1 = jnp.tanh(h)
    # Layers 2/3: cast only the dot operands to the (possibly bf16) weight dtype; accumulate
    # in f32, biases in f32, elementwise math in f32 (v5e-safe).
    h2 = jnp.tanh(jnp.dot(h1.astype(w2.dtype), w2, preferred_element_type=jnp.float32) + b2)
    # b3c carries the bias in cols 0:DIM and a literal 1.0 in col DIM, so the constant-one
    # column of the module output falls out of this single full-width matmul+add.
    return jnp.dot(h2.astype(w3.dtype), w3, preferred_element_type=jnp.float32) + b3c


# ---------------- Pallas kernels ----------------
def _odefunc_fwd_kernel(y_ref, ext_ref, w1s_ref, w1e_ref, b1_ref,
                        w2_ref, b2_ref, w3_ref, b3c_ref, out_ref):
    out_ref[...] = _forward_core(y_ref[...], ext_ref[...], w1s_ref[...], w1e_ref[...],
                                 b1_ref[...], w2_ref[...], b2_ref[...], w3_ref[...],
                                 b3c_ref[...])


def _make_rollout_kernel(k_unroll):
    def kernel(y0_ref, ext_ref, w1s_ref, w1e_ref, b1_ref,
               w2_ref, b2_ref, w3_ref, b3c_ref, traj_ref, y_scr):
        # Weights have constant block indices -> DMA'd into VMEM once and reused across all
        # grid steps.  The state y lives in VMEM scratch across grid steps.
        @pl.when(pl.program_id(0) == 0)
        def _():
            y_scr[...] = y0_ref[...]

        w1s = w1s_ref[...]; w1e = w1e_ref[...]; b1 = b1_ref[...]
        w2 = w2_ref[...]; b2 = b2_ref[...]; w3 = w3_ref[...]; b3c = b3c_ref[...]

        # K Euler steps per grid iteration: amortizes grid-step overhead and gives a
        # (K, B_pad, OUT_PAD) lane-dense output block per writeback.
        y = y_scr[...]
        for k in range(k_unroll):
            deriv = _forward_core(y, ext_ref[k], w1s, w1e, b1, w2, b2, w3, b3c)
            y = y + DT * deriv                                   # explicit Euler step
            traj_ref[k] = y
        y_scr[...] = y
    return kernel


# ---------------- wrappers ----------------
def pack_params(w1, b1, w2, b2, w3, b3, matmul_dtype=jnp.float32):
    """Zero-pad parameters to MXU/lane-friendly shapes (numerically exact).

    matmul_dtype=jnp.bfloat16 casts the dominant w2/w3 operands (f32 accumulation is kept in
    the kernel; biases, layer 1, time channel and drive stay f32).
    """
    hp = H_PAD - NEURAL_NUM
    w1p = jnp.pad(w1, ((0, 0), (0, hp)))
    w1s = w1p[:DIM]                               # (DIM, H_PAD)      state rows of W1
    w1e = w1p[DIM:DIM + EXT_DIM]                  # (EXT_DIM, H_PAD)  ext rows of W1
    b1p = jnp.pad(b1, ((0, 0), (0, hp)))          # (1, H_PAD)
    w2p = jnp.pad(w2, ((0, hp), (0, hp))).astype(matmul_dtype)                 # (H_PAD, H_PAD)
    b2p = jnp.pad(b2, ((0, 0), (0, hp)))          # (1, H_PAD)
    w3p = jnp.pad(w3, ((0, hp), (0, OUT_PAD - DIM))).astype(matmul_dtype)      # (H_PAD, OUT_PAD)
    b3c = jnp.pad(b3, ((0, 0), (0, OUT_PAD - DIM))).at[0, DIM].set(1.0)        # (1, OUT_PAD) f32
    return (w1s, w1e, b1p, w2p, b2p, w3p, b3c)


@jax.jit
def odefunc_forward(t, y, packed_params, sequence):
    """Single forward(t, y) evaluation (t unused, as in the module)."""
    del t
    y = y.astype(jnp.float32)
    B = y.shape[0]
    # External drive computed in plain JAX from the time channel; fed as a tiny input.
    ext = _ext_drive(y[:, DIM:DIM + 1], sequence)                       # (B, EXT_DIM)
    B_pad = max(8, ((B + 7) // 8) * 8)
    if B_pad != B:
        y = jnp.pad(y, ((0, B_pad - B), (0, 0)))
        ext = jnp.pad(ext, ((0, B_pad - B), (0, 0)))
    vmem = pl.BlockSpec(memory_space=pltpu.MemorySpace.VMEM)
    out = pl.pallas_call(
        _odefunc_fwd_kernel,
        out_shape=jax.ShapeDtypeStruct((B_pad, OUT_PAD), jnp.float32),
        in_specs=[vmem] * 9,
        out_specs=vmem,
    )(y, ext, *packed_params)
    return out[:B, :DIM + 1]


@partial(jax.jit, static_argnames=("num_steps", "k_unroll"))
def odefunc_rollout(y0, packed_params, sequence, *, num_steps, k_unroll=8):
    """Fused explicit-Euler rollout: y_{n+1} = y_n + dt * forward(t, y_n), K steps per grid iter."""
    y0 = y0.astype(jnp.float32)
    B = y0.shape[0]
    B_pad = max(8, ((B + 7) // 8) * 8)
    n_blocks = pl.cdiv(num_steps, k_unroll)
    total = n_blocks * k_unroll

    # Precompute the external drive for every step in plain JAX.  The derivative's time column
    # is exactly 1.0, so tt_n is the n-fold sequential f32 accumulation of DT starting from
    # y0's time column -- this matches the in-kernel (and reference) recurrence bit-exactly.
    tt0 = y0[:, DIM]                                                    # (B,)
    def _acc(tt, _):
        return tt + jnp.float32(DT), tt
    _, tts = jax.lax.scan(_acc, tt0, None, length=total)                # (total, B); tts[n] = tt at step n
    ext = _ext_drive(tts[:, :, None], sequence)                         # (total, B, EXT_DIM)
    if B_pad != B:
        ext = jnp.pad(ext, ((0, 0), (0, B_pad - B), (0, 0)))

    y0p = jnp.zeros((B_pad, OUT_PAD), jnp.float32).at[:B, :DIM + 1].set(y0)

    def _const(shape):
        return pl.BlockSpec(shape, lambda s: (0,) * len(shape))         # weights stay resident

    in_specs = [
        _const((B_pad, OUT_PAD)),                                       # y0
        pl.BlockSpec((k_unroll, B_pad, EXT_DIM), lambda s: (s, 0, 0)),  # per-step drive block
        _const((DIM, H_PAD)),          # w1 state rows
        _const((EXT_DIM, H_PAD)),      # w1 ext rows
        _const((1, H_PAD)),            # b1
        _const((H_PAD, H_PAD)),        # w2
        _const((1, H_PAD)),            # b2
        _const((H_PAD, OUT_PAD)),      # w3
        _const((1, OUT_PAD)),          # b3 + const column
    ]
    traj = pl.pallas_call(
        _make_rollout_kernel(k_unroll),
        out_shape=jax.ShapeDtypeStruct((total, B_pad, OUT_PAD), jnp.float32),
        grid=(n_blocks,),
        in_specs=in_specs,
        out_specs=pl.BlockSpec((k_unroll, B_pad, OUT_PAD), lambda s: (s, 0, 0)),
        scratch_shapes=[pltpu.VMEM((B_pad, OUT_PAD), jnp.float32)],
        compiler_params=pltpu.CompilerParams(dimension_semantics=("arbitrary",)),
    )(y0p, ext, *packed_params)
    # TODO(synk): for million-step trajectories, pack only the DIM+1 useful columns per step
    # before writeback to cut trajectory HBM volume ~25x (not needed at demo step counts).
    return traj[:num_steps, :B, :DIM + 1]


# ---------------- pure-JAX reference (correctness check) ----------------
def odefunc_forward_ref(t, y, params, sequence):
    del t
    w1, b1, w2, b2, w3, b3 = params
    hp = jax.lax.Precision.HIGHEST
    tt = y[..., DIM:]
    ext = get_ext_sin_ref(tt, sequence)
    for i in range(1, EXT_DIM):
        ext = jnp.concatenate([ext, get_ext_sin_ref(tt + i * DT, sequence)], axis=-1)
    x = jnp.concatenate([y[..., :DIM], ext], axis=-1)
    h1 = jnp.tanh(jnp.dot(x, w1, precision=hp) + b1)
    h2 = jnp.tanh(jnp.dot(h1, w2, precision=hp) + b2)
    s0 = jnp.dot(h2, w3, precision=hp) + b3
    const = jnp.ones((y.shape[0], 1), dtype=s0.dtype)
    return jnp.concatenate([s0, const], axis=-1)


def odefunc_rollout_ref(y0, params, sequence, num_steps):
    ys, y = [], y0
    for _ in range(num_steps):
        y = y + DT * odefunc_forward_ref(None, y, params, sequence)
        ys.append(y)
    return jnp.stack(ys, axis=0)


if __name__ == "__main__":
    # External drive sequence, exactly as in the module's 'rand_sin' branch.
    np.random.seed(6)
    sequence = jnp.asarray(
        (np.random.rand(6001) * 2.0 - 1.0)[DISCARD // SAMPLE_P:], dtype=jnp.float32)
    assert sequence.shape[0] == SEQ_LEN

    # Deterministic parameter init: nn.init.normal_(mean=0, std=0.1) for ext0's W and b.
    key = jax.random.PRNGKey(0)
    kw1, kb1, kw2, kb2, kw3, kb3, ky1, ky2 = jax.random.split(key, 8)
    in_dim = DIM + EXT_DIM + EXT2_DIM  # 6
    w1 = 0.1 * jax.random.normal(kw1, (in_dim, NEURAL_NUM), jnp.float32)
    b1 = 0.1 * jax.random.normal(kb1, (1, NEURAL_NUM), jnp.float32)
    w2 = 0.1 * jax.random.normal(kw2, (NEURAL_NUM, NEURAL_NUM), jnp.float32)
    b2 = 0.1 * jax.random.normal(kb2, (1, NEURAL_NUM), jnp.float32)
    w3 = 0.1 * jax.random.normal(kw3, (NEURAL_NUM, DIM), jnp.float32)
    b3 = 0.1 * jax.random.normal(kb3, (1, DIM), jnp.float32)
    params = (w1, b1, w2, b2, w3, b3)
    # TODO(synk): the ext1 sub-network (Linear(5,200)-Tanh-...) and the 'rand_txt'/'mg'/ext_in2
    # branches are defined in __init__ but unused by forward() with the defaults, so they are
    # not instantiated here.

    packed_f32 = pack_params(*params)                                  # f32 matmul operands
    packed_bf16 = pack_params(*params, matmul_dtype=jnp.bfloat16)      # bf16 w2/w3 (v6e/v7x)

    # Example state y: (batch, dim + 1); first 4 columns = dynamical state,
    # last column = the carried time value (kept in [0, 5) so the sequence index is valid).
    batch = 8
    y_state = jax.random.normal(ky1, (batch, DIM), jnp.float32)
    y_time = 5.0 * jax.random.uniform(ky2, (batch, 1), jnp.float32)
    y = jnp.concatenate([y_state, y_time], axis=-1)          # (8, 5)
    t = jnp.zeros(())                                        # unused by forward

    # Single forward evaluation (fused kernel, drive precomputed) vs. reference.
    out = jax.block_until_ready(odefunc_forward(t, y, packed_f32, sequence))
    ref = odefunc_forward_ref(t, y, params, sequence)
    np.testing.assert_allclose(np.asarray(out), np.asarray(ref), rtol=1e-4, atol=1e-4)

    # Fused multi-step Euler rollout (weights resident, K=8 steps per grid iter) vs. reference.
    num_steps = 20
    traj = jax.block_until_ready(
        odefunc_rollout(y, packed_f32, sequence, num_steps=num_steps, k_unroll=8))
    traj_ref = odefunc_rollout_ref(y, params, sequence, num_steps)
    np.testing.assert_allclose(np.asarray(traj), np.asarray(traj_ref), rtol=1e-3, atol=1e-3)

    # bf16 matmul-operand variant (halves w2/w3 VMEM->MXU streaming on v6e/v7x; f32 accumulation,
    # f32 time channel / drive).  Looser tolerance vs. the f32 reference.
    out_bf16 = jax.block_until_ready(odefunc_forward(t, y, packed_bf16, sequence))
    np.testing.assert_allclose(np.asarray(out_bf16), np.asarray(ref), rtol=5e-2, atol=5e-2)
    traj_bf16 = jax.block_until_ready(
        odefunc_rollout(y, packed_bf16, sequence, num_steps=num_steps, k_unroll=8))
    np.testing.assert_allclose(np.asarray(traj_bf16), np.asarray(traj_ref), rtol=5e-2, atol=5e-2)

    print("KERNEL_OK")
</pallas_src>

<mosaic_0001>
module attributes {stable_mosaic.version = 11 : i64} {
  func.func @_odefunc_fwd_kernel(%arg0: memref<8x5xf32, #tpu.memory_space<vmem>>, %arg1: memref<8x2xf32, #tpu.memory_space<vmem>>, %arg2: memref<4x512xf32, #tpu.memory_space<vmem>>, %arg3: memref<2x512xf32, #tpu.memory_space<vmem>>, %arg4: memref<1x512xf32, #tpu.memory_space<vmem>>, %arg5: memref<512x512xf32, #tpu.memory_space<vmem>>, %arg6: memref<1x512xf32, #tpu.memory_space<vmem>>, %arg7: memref<512x128xf32, #tpu.memory_space<vmem>>, %arg8: memref<1x128xf32, #tpu.memory_space<vmem>>, %arg9: memref<8x128xf32, #tpu.memory_space<vmem>>) attributes {dimension_semantics = [], scalar_prefetch = 0 : i64, scratch_operands = 0 : i64, tpu.core_type = #tpu.core_type<tc>} {
    %c0 = arith.constant 0 : index
    %c0_0 = arith.constant 0 : index
    %0 = vector.load %arg0[%c0, %c0_0] : memref<8x5xf32, #tpu.memory_space<vmem>>, vector<8x5xf32>
    %c0_1 = arith.constant 0 : index
    %c0_2 = arith.constant 0 : index
    %1 = vector.load %arg1[%c0_1, %c0_2] : memref<8x2xf32, #tpu.memory_space<vmem>>, vector<8x2xf32>
    %c0_3 = arith.constant 0 : index
    %c0_4 = arith.constant 0 : index
    %2 = vector.load %arg2[%c0_3, %c0_4] : memref<4x512xf32, #tpu.memory_space<vmem>>, vector<4x512xf32>
    %c0_5 = arith.constant 0 : index
    %c0_6 = arith.constant 0 : index
    %3 = vector.load %arg3[%c0_5, %c0_6] : memref<2x512xf32, #tpu.memory_space<vmem>>, vector<2x512xf32>
    %c0_7 = arith.constant 0 : index
    %c0_8 = arith.constant 0 : index
    %4 = vector.load %arg4[%c0_7, %c0_8] : memref<1x512xf32, #tpu.memory_space<vmem>>, vector<1x512xf32>
    %c0_9 = arith.constant 0 : index
    %c0_10 = arith.constant 0 : index
    %5 = vector.load %arg5[%c0_9, %c0_10] : memref<512x512xf32, #tpu.memory_space<vmem>>, vector<512x512xf32>
    %c0_11 = arith.constant 0 : index
    %c0_12 = arith.constant 0 : index
    %6 = vector.load %arg6[%c0_11, %c0_12] : memref<1x512xf32, #tpu.memory_space<vmem>>, vector<1x512xf32>
    %c0_13 = arith.constant 0 : index
    %c0_14 = arith.constant 0 : index
    %7 = vector.load %arg7[%c0_13, %c0_14] : memref<512x128xf32, #tpu.memory_space<vmem>>, vector<512x128xf32>
    %c0_15 = arith.constant 0 : index
    %c0_16 = arith.constant 0 : index
    %8 = vector.load %arg8[%c0_15, %c0_16] : memref<1x128xf32, #tpu.memory_space<vmem>>, vector<1x128xf32>
    %9 = vector.extract_strided_slice %0 {offsets = [0, 0], sizes = [8, 4], strides = [1, 1]} : vector<8x5xf32> to vector<8x4xf32>
    %cst = arith.constant dense<0.000000e+00> : vector<8x512xf32>
    %10 = tpu.matmul %9, %2, %cst {dimension_numbers = #tpu.dot_dimension_numbers<[1], [0], [0], [1], [0, 0, 1, 1], [], []>} : vector<8x4xf32>, vector<4x512xf32>, vector<8x512xf32> -> vector<8x512xf32>
    %11 = vector.broadcast %4 : vector<1x512xf32> to vector<8x512xf32>
    %12 = arith.addf %10, %11 : vector<8x512xf32>
    %13 = vector.extract_strided_slice %1 {offsets = [0, 0], sizes = [8, 1], strides = [1, 1]} : vector<8x2xf32> to vector<8x1xf32>
    %14 = vector.extract_strided_slice %3 {offsets = [0, 0], sizes = [1, 512], strides = [1, 1]} : vector<2x512xf32> to vector<1x512xf32>
    %15 = vector.broadcast %13 : vector<8x1xf32> to vector<8x512xf32>
    %16 = vector.broadcast %14 : vector<1x512xf32> to vector<8x512xf32>
    %17 = arith.mulf %15, %16 : vector<8x512xf32>
    %18 = arith.addf %12, %17 : vector<8x512xf32>
    %19 = vector.extract_strided_slice %1 {offsets = [0, 1], sizes = [8, 1], strides = [1, 1]} : vector<8x2xf32> to vector<8x1xf32>
    %20 = vector.extract_strided_slice %3 {offsets = [1, 0], sizes = [1, 512], strides = [1, 1]} : vector<2x512xf32> to vector<1x512xf32>
    %21 = vector.broadcast %19 : vector<8x1xf32> to vector<8x512xf32>
    %22 = vector.broadcast %20 : vector<1x512xf32> to vector<8x512xf32>
    %23 = arith.mulf %21, %22 : vector<8x512xf32>
    %24 = arith.addf %18, %23 : vector<8x512xf32>
    %25 = math.tanh %24 : vector<8x512xf32>
    %cst_17 = arith.constant dense<0.000000e+00> : vector<8x512xf32>
    %26 = tpu.matmul %25, %5, %cst_17 {dimension_numbers = #tpu.dot_dimension_numbers<[1], [0], [0], [1], [0, 0, 1, 1], [], []>} : vector<8x512xf32>, vector<512x512xf32>, vector<8x512xf32> -> vector<8x512xf32>
    %27 = vector.broadcast %6 : vector<1x512xf32> to vector<8x512xf32>
    %28 = arith.addf %26, %27 : vector<8x512xf32>
    %29 = math.tanh %28 : vector<8x512xf32>
    %cst_18 = arith.constant dense<0.000000e+00> : vector<8x128xf32>
    %30 = tpu.matmul %29, %7, %cst_18 {dimension_numbers = #tpu.dot_dimension_numbers<[1], [0], [0], [1], [0, 0, 1, 1], [], []>} : vector<8x512xf32>, vector<512x128xf32>, vector<8x128xf32> -> vector<8x128xf32>
    %31 = vector.broadcast %8 : vector<1x128xf32> to vector<8x128xf32>
    %32 = arith.addf %30, %31 : vector<8x128xf32>
    %c0_19 = arith.constant 0 : index
    %c0_20 = arith.constant 0 : index
    %33 = vector.load %arg9[%c0_19, %c0_20] : memref<8x128xf32, #tpu.memory_space<vmem>>, vector<8x128xf32>
    tpu.vector_store %arg9[%c0_19, %c0_20], %32 {strides = array<i32>} : memref<8x128xf32, #tpu.memory_space<vmem>>, vector<8x128xf32>,
    return
  }
}

</mosaic_0001>

<llo_original>
// kernel: odefunc_forward.1
$region0: #{odefunc_forward.1}
  #allocation0 [shape = 'u32[]', space=smem, size = 0x4, offset = 0x4, fixed_abs, tag = 'smem constant byte address 0x4 - core index']
  #allocation1 [shape = 'u32[144,128]{1,0:T(1,128)}', space=vmem, size = 0x12000, scoped, tag = 'internal scratch']
  %s0 = inlined_call_operand.vmem [shape: f32[8,5], index: 0, kind: input, shape index: {}]
  %s1 = inlined_call_operand.vmem [shape: f32[8,2], index: 1, kind: input, shape index: {}]
  %s2 = inlined_call_operand.vmem [shape: f32[4,512], index: 2, kind: input, shape index: {}]
  %s3 = inlined_call_operand.vmem [shape: f32[2,512], index: 3, kind: input, shape index: {}]
  %s4 = inlined_call_operand.vmem [shape: f32[1,512], index: 4, kind: input, shape index: {}]
  %s5 = inlined_call_operand.vmem [shape: f32[512,512], index: 5, kind: input, shape index: {}]
  %s6 = inlined_call_operand.vmem [shape: f32[1,512], index: 6, kind: input, shape index: {}]
  %s7 = inlined_call_operand.hbm [shape: f32[512,128], index: 7, kind: input, shape index: {}]
  %s8 = inlined_call_operand.vmem [shape: f32[1,128], index: 8, kind: input, shape index: {}]
  %s9 = inlined_call_operand.hbm [shape: f32[8,128], index: 9, kind: output, shape index: {}]
  %s10 = sld [smem:[#allocation0]]
  $region50: #{odefunc_forward.1} parent=0
    _
  %s12 = ssub.s32 1, %s10
  %s13 = scalar_select 0, %s12, %s10
  $region1: #{odefunc_forward.1} parent=0
    #allocation2 [shape = 'u8[262144]{0}', space=vmem, size = 0x40000, scoped, tag = 'input window, operand 7, single buffered']
    #allocation3 [shape = 's32[1]{0}', space=sflag, size = 0x4, scoped, tag = 'scoped memory for odefunc_forward.1']
    #allocation4 [shape = 's32[1]{0}', space=sflag, size = 0x4, scoped, tag = 'scoped memory for odefunc_forward.1']
    #allocation5 [shape = 'u8[4096]{0}', space=vmem, size = 0x1000, scoped, tag = 'output window, operand 0, single buffered']
    %14 = vsyncpa [#allocation3], 0
    %15 = vsyncpa [#allocation4], 0
    // Predicated region
    $region2: #{odefunc_forward.1} parent=1 // pred_check
      _
    $region3: #{odefunc_forward.1} parent=1 // pred_check_branch
      %17 = sbr.rel (0) target = $region5
    $region4: #{odefunc_forward.1} parent=1 // pred_region
      _
    $region5: #{odefunc_forward.1} parent=1 // pred_fallthru
      _
    // Predicated region
    $region6: #{odefunc_forward.1} parent=1 // pred_check
      _
    $region7: #{odefunc_forward.1} parent=1 // pred_check_branch
      %19 = sbr.rel (0) target = $region9
    $region8: #{odefunc_forward.1} parent=1 // pred_region
      _
    $region9: #{odefunc_forward.1} parent=1 // pred_fallthru
      _
    // Predicated region
    $region10: #{odefunc_forward.1} parent=1 // pred_check
      _
    $region11: #{odefunc_forward.1} parent=1 // pred_check_branch
      %21 = sbr.rel (0) target = $region13
    $region12: #{odefunc_forward.1} parent=1 // pred_region
      _
    $region13: #{odefunc_forward.1} parent=1 // pred_fallthru
      _
    // Predicated region
    $region14: #{odefunc_forward.1} parent=1 // pred_check
      _
    $region15: #{odefunc_forward.1} parent=1 // pred_check_branch
      %23 = sbr.rel (0) target = $region17
    $region16: #{odefunc_forward.1} parent=1 // pred_region
      _
    $region17: #{odefunc_forward.1} parent=1 // pred_fallthru
      _
    // Predicated region
    $region18: #{odefunc_forward.1} parent=1 // pred_check
      _
    $region19: #{odefunc_forward.1} parent=1 // pred_check_branch
      %25 = sbr.rel (0) target = $region21
    $region20: #{odefunc_forward.1} parent=1 // pred_region
      _
    $region21: #{odefunc_forward.1} parent=1 // pred_fallthru
      _
    // Predicated region
    $region22: #{odefunc_forward.1} parent=1 // pred_check
      _
    $region23: #{odefunc_forward.1} parent=1 // pred_check_branch
      %27 = sbr.rel (0) target = $region25
    $region24: #{odefunc_forward.1} parent=1 // pred_region
      _
    $region25: #{odefunc_forward.1} parent=1 // pred_fallthru
      _
    // Predicated region
    $region26: #{odefunc_forward.1} parent=1 // pred_check
      _
    $region27: #{odefunc_forward.1} parent=1 // pred_check_branch
      %29 = sbr.rel (0) target = $region29
    $region28: #{odefunc_forward.1} parent=1 // pred_region
      _
    $region29: #{odefunc_forward.1} parent=1 // pred_fallthru
      _
    // Predicated region
    $region30: #{odefunc_forward.1} parent=1 // pred_check
      _
    $region31: #{odefunc_forward.1} parent=1 // pred_check_branch
      %31 = sbr.rel (0) target = $region33
    $region32: #{odefunc_forward.1} parent=1 // pred_region
      %s33 = ssub.s32 8192, 8192
      %34 = vsyncadd [#allocation3], %s33
      %s35 = sshll.u32 [#allocation2], 4
      %s36 = int_to_ptr.vmem [resolvable:$true] %s35
      %41 = dma.hbm_to_vmem [thread:$0]  %s7, 8192, %s36, [#allocation3], 128, 128, 8
    $region33: #{odefunc_forward.1} parent=1 // pred_fallthru
      _
    // Predicated region
    $region34: #{odefunc_forward.1} parent=1 // pred_check
      _
    $region35: #{odefunc_forward.1} parent=1 // pred_check_branch
      %43 = sbr.rel (0) target = $region37
    $region36: #{odefunc_forward.1} parent=1 // pred_region
      _
    $region37: #{odefunc_forward.1} parent=1 // pred_fallthru
      _
    // Predicated region
    $region38: #{odefunc_forward.1} parent=1 // pred_check
      _
    $region39: #{odefunc_forward.1} parent=1 // pred_check_branch
      %45 = sbr.rel (0) target = $region41
    $region40: #{odefunc_forward.1} parent=1 // pred_region
      %46 = dma.done [#allocation3], 8192
    $region41: #{odefunc_forward.1} parent=1 // pred_fallthru
      _
    %v47 = vld [vmem:[%s0] sm:$0xff]
    %v48 = vld [vmem:[%s1] sm:$0xff]
    %v49 = vld [vmem:[%s2] sm:$0xff]
    %v50 = vld [vmem:[%s2 + $0x8] sm:$0xff]
    %v51 = vld [vmem:[%s3] sm:$0xff]
    %v52 = vld [vmem:[%s4] sm:$0xf]
    %v53 = vld [vmem:[%s5] sm:$0xff]
    %v54 = vld [vmem:[%s5 + $0x8] sm:$0xff]
    %v55 = vld [vmem:[%s5 + $0x10] sm:$0xff]
    %v56 = vld [vmem:[%s5 + $0x18] sm:$0xff]
    %v57 = vld [vmem:[%s5 + $0x20] sm:$0xff]
    %v58 = vld [vmem:[%s5 + $0x28] sm:$0xff]
    %v59 = vld [vmem:[%s5 + $0x30] sm:$0xff]
    %v60 = vld [vmem:[%s5 + $0x38] sm:$0xff]
    %v61 = vld [vmem:[%s5 + $0x40] sm:$0xff]
    %v62 = vld [vmem:[%s5 + $0x48] sm:$0xff]
    %v63 = vld [vmem:[%s5 + $0x50] sm:$0xff]
    %v64 = vld [vmem:[%s5 + $0x58] sm:$0xff]
    %v65 = vld [vmem:[%s5 + $0x60] sm:$0xff]
    %v66 = vld [vmem:[%s5 + $0x68] sm:$0xff]
    %v67 = vld [vmem:[%s5 + $0x70] sm:$0xff]
    %v68 = vld [vmem:[%s5 + $0x78] sm:$0xff]
    %v69 = vld [vmem:[%s5 + $0x80] sm:$0xff]
    %v70 = vld [vmem:[%s5 + $0x88] sm:$0xff]
    %v71 = vld [vmem:[%s5 + $0x90] sm:$0xff]
    %v72 = vld [vmem:[%s5 + $0x98] sm:$0xff]
    %v73 = vld [vmem:[%s5 + $0xa0] sm:$0xff]
    %v74 = vld [vmem:[%s5 + $0xa8] sm:$0xff]
    %v75 = vld [vmem:[%s5 + $0xb0] sm:$0xff]
    %v76 = vld [vmem:[%s5 + $0xb8] sm:$0xff]
    %v77 = vld [vmem:[%s5 + $0xc0] sm:$0xff]
    %v78 = vld [vmem:[%s5 + $0xc8] sm:$0xff]
    %v79 = vld [vmem:[%s5 + $0xd0] sm:$0xff]
    %v80 = vld [vmem:[%s5 + $0xd8] sm:$0xff]
    %v81 = vld [vmem:[%s5 + $0xe0] sm:$0xff]
    %v82 = vld [vmem:[%s5 + $0xe8] sm:$0xff]
    %v83 = vld [vmem:[%s5 + $0xf0] sm:$0xff]
    %v84 = vld [vmem:[%s5 + $0xf8] sm:$0xff]
    %v85 = vld [vmem:[%s5 + $0x100] sm:$0xff]
    %v86 = vld [vmem:[%s5 + $0x108] sm:$0xff]
    %v87 = vld [vmem:[%s5 + $0x110] sm:$0xff]
    %v88 = vld [vmem:[%s5 + $0x118] sm:$0xff]
    %v89 = vld [vmem:[%s5 + $0x120] sm:$0xff]
    %v90 = vld [vmem:[%s5 + $0x128] sm:$0xff]
    %v91 = vld [vmem:[%s5 + $0x130] sm:$0xff]
    %v92 = vld [vmem:[%s5 + $0x138] sm:$0xff]
    %v93 = vld [vmem:[%s5 + $0x140] sm:$0xff]
    %v94 = vld [vmem:[%s5 + $0x148] sm:$0xff]
    %v95 = vld [vmem:[%s5 + $0x150] sm:$0xff]
    %v96 = vld [vmem:[%s5 + $0x158] sm:$0xff]
    %v97 = vld [vmem:[%s5 + $0x160] sm:$0xff]
    %v98 = vld [vmem:[%s5 + $0x168] sm:$0xff]
    %v99 = vld [vmem:[%s5 + $0x170] sm:$0xff]
    %v100 = vld [vmem:[%s5 + $0x178] sm:$0xff]
    %v101 = vld [vmem:[%s5 + $0x180] sm:$0xff]
    %v102 = vld [vmem:[%s5 + $0x188] sm:$0xff]
    %v103 = vld [vmem:[%s5 + $0x190] sm:$0xff]
    %v104 = vld [vmem:[%s5 + $0x198] sm:$0xff]
    %v105 = vld [vmem:[%s5 + $0x1a0] sm:$0xff]
    %v106 = vld [vmem:[%s5 + $0x1a8] sm:$0xff]
    %v107 = vld [vmem:[%s5 + $0x1b0] sm:$0xff]
    %v108 = vld [vmem:[%s5 + $0x1b8] sm:$0xff]
    %v109 = vld [vmem:[%s5 + $0x1c0] sm:$0xff]
    %v110 = vld [vmem:[%s5 + $0x1c8] sm:$0xff]
    %v111 = vld [vmem:[%s5 + $0x1d0] sm:$0xff]
    %v112 = vld [vmem:[%s5 + $0x1d8] sm:$0xff]
    %v113 = vld [vmem:[%s5 + $0x1e0] sm:$0xff]
    %v114 = vld [vmem:[%s5 + $0x1e8] sm:$0xff]
    %v115 = vld [vmem:[%s5 + $0x1f0] sm:$0xff]
    %v116 = vld [vmem:[%s5 + $0x1f8] sm:$0xff]
    %v117 = vld [vmem:[%s5 + $0x200] sm:$0xff]
    %v118 = vld [vmem:[%s5 + $0x208] sm:$0xff]
    %v119 = vld [vmem:[%s5 + $0x210] sm:$0xff]
    %v120 = vld [vmem:[%s5 + $0x218] sm:$0xff]
    %v121 = vld [vmem:[%s5 + $0x220] sm:$0xff]
    %v122 = vld [vmem:[%s5 + $0x228] sm:$0xff]
    %v123 = vld [vmem:[%s5 + $0x230] sm:$0xff]
    %v124 = vld [vmem:[%s5 + $0x238] sm:$0xff]
    %v125 = vld [vmem:[%s5 + $0x240] sm:$0xff]
    %v126 = vld [vmem:[%s5 + $0x248] sm:$0xff]
    %v127 = vld [vmem:[%s5 + $0x250] sm:$0xff]
    %v128 = vld [vmem:[%s5 + $0x258] sm:$0xff]
    %v129 = vld [vmem:[%s5 + $0x260] sm:$0xff]
    %v130 = vld [vmem:[%s5 + $0x268] sm:$0xff]
    %v131 = vld [vmem:[%s5 + $0x270] sm:$0xff]
    %v132 = vld [vmem:[%s5 + $0x278] sm:$0xff]
    %v133 = vld [vmem:[%s5 + $0x280] sm:$0xff]
    %v134 = vld [vmem:[%s5 + $0x288] sm:$0xff]
    %v135 = vld [vmem:[%s5 + $0x290] sm:$0xff]
    %v136 = vld [vmem:[%s5 + $0x298] sm:$0xff]
    %v137 = vld [vmem:[%s5 + $0x2a0] sm:$0xff]
    %v138 = vld [vmem:[%s5 + $0x2a8] sm:$0xff]
    %v139 = vld [vmem:[%s5 + $0x2b0] sm:$0xff]
    %v140 = vld [vmem:[%s5 + $0x2b8] sm:$0xff]
    %v141 = vld [vmem:[%s5 + $0x2c0] sm:$0xff]
    %v142 = vld [vmem:[%s5 + $0x2c8] sm:$0xff]
    %v143 = vld [vmem:[%s5 + $0x2d0] sm:$0xff]
    %v144 = vld [vmem:[%s5 + $0x2d8] sm:$0xff]
    %v145 = vld [vmem:[%s5 + $0x2e0] sm:$0xff]
    %v146 = vld [vmem:[%s5 + $0x2e8] sm:$0xff]
    %v147 = vld [vmem:[%s5 + $0x2f0] sm:$0xff]
    %v148 = vld [vmem:[%s5 + $0x2f8] sm:$0xff]
    %v149 = vld [vmem:[%s5 + $0x300] sm:$0xff]
    %v150 = vld [vmem:[%s5 + $0x308] sm:$0xff]
    %v151 = vld [vmem:[%s5 + $0x310] sm:$0xff]
    %v152 = vld [vmem:[%s5 + $0x318] sm:$0xff]
    %v153 = vld [vmem:[%s5 + $0x320] sm:$0xff]
    %v154 = vld [vmem:[%s5 + $0x328] sm:$0xff]
    %v155 = vld [vmem:[%s5 + $0x330] sm:$0xff]
    %v156 = vld [vmem:[%s5 + $0x338] sm:$0xff]
    %v157 = vld [vmem:[%s5 + $0x340] sm:$0xff]
    %v158 = vld [vmem:[%s5 + $0x348] sm:$0xff]
    %v159 = vld [vmem:[%s5 + $0x350] sm:$0xff]
    %v160 = vld [vmem:[%s5 + $0x358] sm:$0xff]
    %v161 = vld [vmem:[%s5 + $0x360] sm:$0xff]
    %v162 = vld [vmem:[%s5 + $0x368] sm:$0xff]
    %v163 = vld [vmem:[%s5 + $0x370] sm:$0xff]
    %v164 = vld [vmem:[%s5 + $0x378] sm:$0xff]
    %v165 = vld [vmem:[%s5 + $0x380] sm:$0xff]
    %v166 = vld [vmem:[%s5 + $0x388] sm:$0xff]
    %v167 = vld [vmem:[%s5 + $0x390] sm:$0xff]
    %v168 = vld [vmem:[%s5 + $0x398] sm:$0xff]
    %v169 = vld [vmem:[%s5 + $0x3a0] sm:$0xff]
    %v170 = vld [vmem:[%s5 + $0x3a8] sm:$0xff]
    %v171 = vld [vmem:[%s5 + $0x3b0] sm:$0xff]
    %v172 = vld [vmem:[%s5 + $0x3b8] sm:$0xff]
    %v173 = vld [vmem:[%s5 + $0x3c0] sm:$0xff]
    %v174 = vld [vmem:[%s5 + $0x3c8] sm:$0xff]
    %v175 = vld [vmem:[%s5 + $0x3d0] sm:$0xff]
    %v176 = vld [vmem:[%s5 + $0x3d8] sm:$0xff]
    %v177 = vld [vmem:[%s5 + $0x3e0] sm:$0xff]
    %v178 = vld [vmem:[%s5 + $0x3e8] sm:$0xff]
    %v179 = vld [vmem:[%s5 + $0x3f0] sm:$0xff]
    %v180 = vld [vmem:[%s5 + $0x3f8] sm:$0xff]
    %v181 = vld [vmem:[%s5 + $0x400] sm:$0xff]
    %v182 = vld [vmem:[%s5 + $0x408] sm:$0xff]
    %v183 = vld [vmem:[%s5 + $0x410] sm:$0xff]
    %v184 = vld [vmem:[%s5 + $0x418] sm:$0xff]
    %v185 = vld [vmem:[%s5 + $0x420] sm:$0xff]
    %v186 = vld [vmem:[%s5 + $0x428] sm:$0xff]
    %v187 = vld [vmem:[%s5 + $0x430] sm:$0xff]
    %v188 = vld [vmem:[%s5 + $0x438] sm:$0xff]
    %v189 = vld [vmem:[%s5 + $0x440] sm:$0xff]
    %v190 = vld [vmem:[%s5 + $0x448] sm:$0xff]
    %v191 = vld [vmem:[%s5 + $0x450] sm:$0xff]
    %v192 = vld [vmem:[%s5 + $0x458] sm:$0xff]
    %v193 = vld [vmem:[%s5 + $0x460] sm:$0xff]
    %v194 = vld [vmem:[%s5 + $0x468] sm:$0xff]
    %v195 = vld [vmem:[%s5 + $0x470] sm:$0xff]
    %v196 = vld [vmem:[%s5 + $0x478] sm:$0xff]
    %v197 = vld [vmem:[%s5 + $0x480] sm:$0xff]
    %v198 = vld [vmem:[%s5 + $0x488] sm:$0xff]
    %v199 = vld [vmem:[%s5 + $0x490] sm:$0xff]
    %v200 = vld [vmem:[%s5 + $0x498] sm:$0xff]
    %v201 = vld [vmem:[%s5 + $0x4a0] sm:$0xff]
    %v202 = vld [vmem:[%s5 + $0x4a8] sm:$0xff]
    %v203 = vld [vmem:[%s5 + $0x4b0] sm:$0xff]
    %v204 = vld [vmem:[%s5 + $0x4b8] sm:$0xff]
    %v205 = vld [vmem:[%s5 + $0x4c0] sm:$0xff]
    %v206 = vld [vmem:[%s5 + $0x4c8] sm:$0xff]
    %v207 = vld [vmem:[%s5 + $0x4d0] sm:$0xff]
    %v208 = vld [vmem:[%s5 + $0x4d8] sm:$0xff]
    %v209 = vld [vmem:[%s5 + $0x4e0] sm:$0xff]
    %v210 = vld [vmem:[%s5 + $0x4e8] sm:$0xff]
    %v211 = vld [vmem:[%s5 + $0x4f0] sm:$0xff]
    %v212 = vld [vmem:[%s5 + $0x4f8] sm:$0xff]
    %v213 = vld [vmem:[%s5 + $0x500] sm:$0xff]
    %v214 = vld [vmem:[%s5 + $0x508] sm:$0xff]
    %v215 = vld [vmem:[%s5 + $0x510] sm:$0xff]
    %v216 = vld [vmem:[%s5 + $0x518] sm:$0xff]
    %v217 = vld [vmem:[%s5 + $0x520] sm:$0xff]
    %v218 = vld [vmem:[%s5 + $0x528] sm:$0xff]
    %v219 = vld [vmem:[%s5 + $0x530] sm:$0xff]
    %v220 = vld [vmem:[%s5 + $0x538] sm:$0xff]
    %v221 = vld [vmem:[%s5 + $0x540] sm:$0xff]
    %v222 = vld [vmem:[%s5 + $0x548] sm:$0xff]
    %v223 = vld [vmem:[%s5 + $0x550] sm:$0xff]
    %v224 = vld [vmem:[%s5 + $0x558] sm:$0xff]
    %v225 = vld [vmem:[%s5 + $0x560] sm:$0xff]
    %v226 = vld [vmem:[%s5 + $0x568] sm:$0xff]
    %v227 = vld [vmem:[%s5 + $0x570] sm:$0xff]
    %v228 = vld [vmem:[%s5 + $0x578] sm:$0xff]
    %v229 = vld [vmem:[%s5 + $0x580] sm:$0xff]
    %v230 = vld [vmem:[%s5 + $0x588] sm:$0xff]
    %v231 = vld [vmem:[%s5 + $0x590] sm:$0xff]
    %v232 = vld [vmem:[%s5 + $0x598] sm:$0xff]
    %v233 = vld [vmem:[%s5 + $0x5a0] sm:$0xff]
    %v234 = vld [vmem:[%s5 + $0x5a8] sm:$0xff]
    %v235 = vld [vmem:[%s5 + $0x5b0] sm:$0xff]
    %v236 = vld [vmem:[%s5 + $0x5b8] sm:$0xff]
    %v237 = vld [vmem:[%s5 + $0x5c0] sm:$0xff]
    %v238 = vld [vmem:[%s5 + $0x5c8] sm:$0xff]
    %v239 = vld [vmem:[%s5 + $0x5d0] sm:$0xff]
    %v240 = vld [vmem:[%s5 + $0x5d8] sm:$0xff]
    %v241 = vld [vmem:[%s5 + $0x5e0] sm:$0xff]
    %v242 = vld [vmem:[%s5 + $0x5e8] sm:$0xff]
    %v243 = vld [vmem:[%s5 + $0x5f0] sm:$0xff]
    %v244 = vld [vmem:[%s5 + $0x5f8] sm:$0xff]
    %v245 = vld [vmem:[%s5 + $0x600] sm:$0xff]
    %v246 = vld [vmem:[%s5 + $0x608] sm:$0xff]
    %v247 = vld [vmem:[%s5 + $0x610] sm:$0xff]
    %v248 = vld [vmem:[%s5 + $0x618] sm:$0xff]
    %v249 = vld [vmem:[%s5 + $0x620] sm:$0xff]
    %v250 = vld [vmem:[%s5 + $0x628] sm:$0xff]
    %v251 = vld [vmem:[%s5 + $0x630] sm:$0xff]
    %v252 = vld [vmem:[%s5 + $0x638] sm:$0xff]
    %v253 = vld [vmem:[%s5 + $0x640] sm:$0xff]
    %v254 = vld [vmem:[%s5 + $0x648] sm:$0xff]
    %v255 = vld [vmem:[%s5 + $0x650] sm:$0xff]
    %v256 = vld [vmem:[%s5 + $0x658] sm:$0xff]
    %v257 = vld [vmem:[%s5 + $0x660] sm:$0xff]
    %v258 = vld [vmem:[%s5 + $0x668] sm:$0xff]
    %v259 = vld [vmem:[%s5 + $0x670] sm:$0xff]
    %v260 = vld [vmem:[%s5 + $0x678] sm:$0xff]
    %v261 = vld [vmem:[%s5 + $0x680] sm:$0xff]
    %v262 = vld [vmem:[%s5 + $0x688] sm:$0xff]
    %v263 = vld [vmem:[%s5 + $0x690] sm:$0xff]
    %v264 = vld [vmem:[%s5 + $0x698] sm:$0xff]
    %v265 = vld [vmem:[%s5 + $0x6a0] sm:$0xff]
    %v266 = vld [vmem:[%s5 + $0x6a8] sm:$0xff]
    %v267 = vld [vmem:[%s5 + $0x6b0] sm:$0xff]
    %v268 = vld [vmem:[%s5 + $0x6b8] sm:$0xff]
    %v269 = vld [vmem:[%s5 + $0x6c0] sm:$0xff]
    %v270 = vld [vmem:[%s5 + $0x6c8] sm:$0xff]
    %v271 = vld [vmem:[%s5 + $0x6d0] sm:$0xff]
    %v272 = vld [vmem:[%s5 + $0x6d8] sm:$0xff]
    %v273 = vld [vmem:[%s5 + $0x6e0] sm:$0xff]
    %v274 = vld [vmem:[%s5 + $0x6e8] sm:$0xff]
    %v275 = vld [vmem:[%s5 + $0x6f0] sm:$0xff]
    %v276 = vld [vmem:[%s5 + $0x6f8] sm:$0xff]
    %v277 = vld [vmem:[%s5 + $0x700] sm:$0xff]
    %v278 = vld [vmem:[%s5 + $0x708] sm:$0xff]
    %v279 = vld [vmem:[%s5 + $0x710] sm:$0xff]
    %v280 = vld [vmem:[%s5 + $0x718] sm:$0xff]
    %v281 = vld [vmem:[%s5 + $0x720] sm:$0xff]
    %v282 = vld [vmem:[%s5 + $0x728] sm:$0xff]
    %v283 = vld [vmem:[%s5 + $0x730] sm:$0xff]
    %v284 = vld [vmem:[%s5 + $0x738] sm:$0xff]
    %v285 = vld [vmem:[%s5 + $0x740] sm:$0xff]
    %v286 = vld [vmem:[%s5 + $0x748] sm:$0xff]
    %v287 = vld [vmem:[%s5 + $0x750] sm:$0xff]
    %v288 = vld [vmem:[%s5 + $0x758] sm:$0xff]
    %v289 = vld [vmem:[%s5 + $0x760] sm:$0xff]
    %v290 = vld [vmem:[%s5 + $0x768] sm:$0xff]
    %v291 = vld [vmem:[%s5 + $0x770] sm:$0xff]
    %v292 = vld [vmem:[%s5 + $0x778] sm:$0xff]
    %v293 = vld [vmem:[%s5 + $0x780] sm:$0xff]
    %v294 = vld [vmem:[%s5 + $0x788] sm:$0xff]
    %v295 = vld [vmem:[%s5 + $0x790] sm:$0xff]
    %v296 = vld [vmem:[%s5 + $0x798] sm:$0xff]
    %v297 = vld [vmem:[%s5 + $0x7a0] sm:$0xff]
    %v298 = vld [vmem:[%s5 + $0x7a8] sm:$0xff]
    %v299 = vld [vmem:[%s5 + $0x7b0] sm:$0xff]
    %v300 = vld [vmem:[%s5 + $0x7b8] sm:$0xff]
    %v301 = vld [vmem:[%s5 + $0x7c0] sm:$0xff]
    %v302 = vld [vmem:[%s5 + $0x7c8] sm:$0xff]
    %v303 = vld [vmem:[%s5 + $0x7d0] sm:$0xff]
    %v304 = vld [vmem:[%s5 + $0x7d8] sm:$0xff]
    %v305 = vld [vmem:[%s5 + $0x7e0] sm:$0xff]
    %v306 = vld [vmem:[%s5 + $0x7e8] sm:$0xff]
    %v307 = vld [vmem:[%s5 + $0x7f0] sm:$0xff]
    %v308 = vld [vmem:[%s5 + $0x7f8] sm:$0xff]
    %v309 = vld [vmem:[%s6] sm:$0xf]
    %v310 = vld [vmem:[#allocation2] sm:$0xff]
    %v311 = vld [vmem:[#allocation2 + $0x8] sm:$0xff]
    %v312 = vld [vmem:[#allocation2 + $0x10] sm:$0xff]
    %v313 = vld [vmem:[#allocation2 + $0x18] sm:$0xff]
    %v314 = vld [vmem:[#allocation2 + $0x20] sm:$0xff]
    %v315 = vld [vmem:[#allocation2 + $0x28] sm:$0xff]
    %v316 = vld [vmem:[#allocation2 + $0x30] sm:$0xff]
    %v317 = vld [vmem:[#allocation2 + $0x38] sm:$0xff]
    %v318 = vld [vmem:[#allocation2 + $0x40] sm:$0xff]
    %v319 = vld [vmem:[#allocation2 + $0x48] sm:$0xff]
    %v320 = vld [vmem:[#allocation2 + $0x50] sm:$0xff]
    %v321 = vld [vmem:[#allocation2 + $0x58] sm:$0xff]
    %v322 = vld [vmem:[#allocation2 + $0x60] sm:$0xff]
    %v323 = vld [vmem:[#allocation2 + $0x68] sm:$0xff]
    %v324 = vld [vmem:[#allocation2 + $0x70] sm:$0xff]
    %v325 = vld [vmem:[#allocation2 + $0x78] sm:$0xff]
    %v326 = vld [vmem:[#allocation2 + $0x80] sm:$0xff]
    %v327 = vld [vmem:[#allocation2 + $0x88] sm:$0xff]
    %v328 = vld [vmem:[#allocation2 + $0x90] sm:$0xff]
    %v329 = vld [vmem:[#allocation2 + $0x98] sm:$0xff]
    %v330 = vld [vmem:[#allocation2 + $0xa0] sm:$0xff]
    %v331 = vld [vmem:[#allocation2 + $0xa8] sm:$0xff]
    %v332 = vld [vmem:[#allocation2 + $0xb0] sm:$0xff]
    %v333 = vld [vmem:[#allocation2 + $0xb8] sm:$0xff]
    %v334 = vld [vmem:[#allocation2 + $0xc0] sm:$0xff]
    %v335 = vld [vmem:[#allocation2 + $0xc8] sm:$0xff]
    %v336 = vld [vmem:[#allocation2 + $0xd0] sm:$0xff]
    %v337 = vld [vmem:[#allocation2 + $0xd8] sm:$0xff]
    %v338 = vld [vmem:[#allocation2 + $0xe0] sm:$0xff]
    %v339 = vld [vmem:[#allocation2 + $0xe8] sm:$0xff]
    %v340 = vld [vmem:[#allocation2 + $0xf0] sm:$0xff]
    %v341 = vld [vmem:[#allocation2 + $0xf8] sm:$0xff]
    %v342 = vld [vmem:[#allocation2 + $0x100] sm:$0xff]
    %v343 = vld [vmem:[#allocation2 + $0x108] sm:$0xff]
    %v344 = vld [vmem:[#allocation2 + $0x110] sm:$0xff]
    %v345 = vld [vmem:[#allocation2 + $0x118] sm:$0xff]
    %v346 = vld [vmem:[#allocation2 + $0x120] sm:$0xff]
    %v347 = vld [vmem:[#allocation2 + $0x128] sm:$0xff]
    %v348 = vld [vmem:[#allocation2 + $0x130] sm:$0xff]
    %v349 = vld [vmem:[#allocation2 + $0x138] sm:$0xff]
    %v350 = vld [vmem:[#allocation2 + $0x140] sm:$0xff]
    %v351 = vld [vmem:[#allocation2 + $0x148] sm:$0xff]
    %v352 = vld [vmem:[#allocation2 + $0x150] sm:$0xff]
    %v353 = vld [vmem:[#allocation2 + $0x158] sm:$0xff]
    %v354 = vld [vmem:[#allocation2 + $0x160] sm:$0xff]
    %v355 = vld [vmem:[#allocation2 + $0x168] sm:$0xff]
    %v356 = vld [vmem:[#allocation2 + $0x170] sm:$0xff]
    %v357 = vld [vmem:[#allocation2 + $0x178] sm:$0xff]
    %v358 = vld [vmem:[#allocation2 + $0x180] sm:$0xff]
    %v359 = vld [vmem:[#allocation2 + $0x188] sm:$0xff]
    %v360 = vld [vmem:[#allocation2 + $0x190] sm:$0xff]
    %v361 = vld [vmem:[#allocation2 + $0x198] sm:$0xff]
    %v362 = vld [vmem:[#allocation2 + $0x1a0] sm:$0xff]
    %v363 = vld [vmem:[#allocation2 + $0x1a8] sm:$0xff]
    %v364 = vld [vmem:[#allocation2 + $0x1b0] sm:$0xff]
    %v365 = vld [vmem:[#allocation2 + $0x1b8] sm:$0xff]
    %v366 = vld [vmem:[#allocation2 + $0x1c0] sm:$0xff]
    %v367 = vld [vmem:[#allocation2 + $0x1c8] sm:$0xff]
    %v368 = vld [vmem:[#allocation2 + $0x1d0] sm:$0xff]
    %v369 = vld [vmem:[#allocation2 + $0x1d8] sm:$0xff]
    %v370 = vld [vmem:[#allocation2 + $0x1e0] sm:$0xff]
    %v371 = vld [vmem:[#allocation2 + $0x1e8] sm:$0xff]
    %v372 = vld [vmem:[#allocation2 + $0x1f0] sm:$0xff]
    %v373 = vld [vmem:[#allocation2 + $0x1f8] sm:$0xff]
    %v374 = vld [vmem:[%s8] sm:$0x1]
    %v376 = vlaneseq
    %v377 = vshrl.u32 %v376, 7
    %v378 = vsub.s32 0, %v377
    %v379 = vrot.slane %v52, %v378
    %v380 = vlaneseq
    %v381 = vshrl.u32 %v380, 7
    %v382 = vsub.s32 1, %v381
    %v383 = vrot.slane %v52, %v382
    %v384 = vlaneseq
    %v385 = vshrl.u32 %v384, 7
    %v386 = vsub.s32 2, %v385
    %v387 = vrot.slane %v52, %v386
    %v388 = vlaneseq
    %v389 = vshrl.u32 %v388, 7
    %v390 = vsub.s32 3, %v389
    %v391 = vrot.slane %v52, %v390
    %v398 = vcombine.high %v49, %v49
    %v399 = vcombine.high %v50, %v50
    %vm400 = vcmask 31744
    %v402 = vsel %vm400, %v47, 0
    %vm404 = vcmask 1043456
    %v405 = vsel %vm404, %v49, 0
    %v407 = vsel %vm404, %v398, 0
    %v409 = vsel %vm404, %v50, 0
    %v411 = vsel %vm404, %v399, 0
    %413 = vmatprep.subr.mxu0 %v407
    %414 = vmatpush1.msra.mxu0 %v405
    %415 = vmatprep.subr.mxu0 0.0
    %416 = vmatpush1.msra.mxu0 0.0
    %417 = vmatprep.subr.mxu0 0.0
    %418 = vmatpush1.msra.mxu0 0.0
    %419 = vmatprep.subr.mxu0 0.0
    %420 = vmatpush1.msra.mxu0 0.0
    %421 = vmatprep.subr.mxu0 0.0
    %422 = vmatpush1.msra.mxu0 0.0
    %423 = vmatprep.subr.mxu0 0.0
    %424 = vmatpush1.msra.mxu0 0.0
    %425 = vmatprep.subr.mxu0 0.0
    %426 = vmatpush1.msra.mxu0 0.0
    %427 = vmatprep.subr.mxu0 0.0
    %428 = vmatpush1.msra.mxu0 0.0
    %429 = vmatprep.subr.mxu0 0.0
    %430 = vmatpush1.msra.mxu0 0.0
    %431 = vmatprep.subr.mxu0 0.0
    %432 = vmatpush1.msra.mxu0 0.0
    %433 = vmatprep.subr.mxu0 0.0
    %434 = vmatpush1.msra.mxu0 0.0
    %435 = vmatprep.subr.mxu0 0.0
    %436 = vmatpush1.msra.mxu0 0.0
    %437 = vmatprep.subr.mxu0 0.0
    %438 = vmatpush1.msra.mxu0 0.0
    %439 = vmatprep.subr.mxu0 0.0
    %440 = vmatpush1.msra.mxu0 0.0
    %441 = vmatprep.subr.mxu0 0.0
    %442 = vmatpush1.msra.mxu0 0.0
    %443 = vmatprep.subr.mxu0 0.0
    %444 = vmatpush1.msra.mxu0 0.0
    %445 = vmatprep.subr.mxu0 0.0
    %446 = vmatpush1.msra.mxu0 0.0
    %447 = vmatprep.subr.mxu0 0.0
    %448 = vmatpush1.msra.mxu0 0.0
    %449 = vmatprep.subr.mxu0 0.0
    %450 = vmatpush1.msra.mxu0 0.0
    %451 = vmatprep.subr.mxu0 0.0
    %452 = vmatpush1.msra.mxu0 0.0
    %453 = vmatprep.subr.mxu0 0.0
    %454 = vmatpush1.msra.mxu0 0.0
    %455 = vmatprep.subr.mxu0 0.0
    %456 = vmatpush1.msra.mxu0 0.0
    %457 = vmatprep.subr.mxu0 0.0
    %458 = vmatpush1.msra.mxu0 0.0
    %459 = vmatprep.subr.mxu0 0.0
    %460 = vmatpush1.msra.mxu0 0.0
    %461 = vmatprep.subr.mxu0 0.0
    %462 = vmatpush1.msra.mxu0 0.0
    %463 = vmatprep.subr.mxu0 0.0
    %464 = vmatpush1.msra.mxu0 0.0
    %465 = vmatprep.subr.mxu0 0.0
    %466 = vmatpush1.msra.mxu0 0.0
    %467 = vmatprep.subr.mxu0 0.0
    %468 = vmatpush1.msra.mxu0 0.0
    %469 = vmatprep.subr.mxu0 0.0
    %470 = vmatpush1.msra.mxu0 0.0
    %471 = vmatprep.subr.mxu0 0.0
    %472 = vmatpush1.msra.mxu0 0.0
    %473 = vmatprep.subr.mxu0 0.0
    %474 = vmatpush1.msra.mxu0 0.0
    %475 = vmatprep.subr.mxu0 0.0
    %476 = vmatpush1.msra.mxu0 0.0
    %477 = vmatprep.mubr.f32.mxu0 0.0
    %478 = vmatmul.mubr.f32.gmra.mrb[0].mxu0 %v402
    %v479 = vpop.f32.mrb[0].mxu0
    %v480 = vadd.f32 %v379, %v479
    %v481 = vpop.f32.mrb[0].mxu0
    %v482 = vadd.f32 %v383, %v481
    %483 = vdwg.mxu0
    %484 = vmatprep.subr.mxu0 %v411
    %485 = vmatpush1.msra.mxu0 %v409
    %486 = vmatprep.subr.mxu0 0.0
    %487 = vmatpush1.msra.mxu0 0.0
    %488 = vmatprep.subr.mxu0 0.0
    %489 = vmatpush1.msra.mxu0 0.0
    %490 = vmatprep.subr.mxu0 0.0
    %491 = vmatpush1.msra.mxu0 0.0
    %492 = vmatprep.subr.mxu0 0.0
    %493 = vmatpush1.msra.mxu0 0.0
    %494 = vmatprep.subr.mxu0 0.0
    %495 = vmatpush1.msra.mxu0 0.0
    %496 = vmatprep.subr.mxu0 0.0
    %497 = vmatpush1.msra.mxu0 0.0
    %498 = vmatprep.subr.mxu0 0.0
    %499 = vmatpush1.msra.mxu0 0.0
    %500 = vmatprep.subr.mxu0 0.0
    %501 = vmatpush1.msra.mxu0 0.0
    %502 = vmatprep.subr.mxu0 0.0
    %503 = vmatpush1.msra.mxu0 0.0
    %504 = vmatprep.subr.mxu0 0.0
    %505 = vmatpush1.msra.mxu0 0.0
    %506 = vmatprep.subr.mxu0 0.0
    %507 = vmatpush1.msra.mxu0 0.0
    %508 = vmatprep.subr.mxu0 0.0
    %509 = vmatpush1.msra.mxu0 0.0
    %510 = vmatprep.subr.mxu0 0.0
    %511 = vmatpush1.msra.mxu0 0.0
    %512 = vmatprep.subr.mxu0 0.0
    %513 = vmatpush1.msra.mxu0 0.0
    %514 = vmatprep.subr.mxu0 0.0
    %515 = vmatpush1.msra.mxu0 0.0
    %516 = vmatprep.subr.mxu0 0.0
    %517 = vmatpush1.msra.mxu0 0.0
    %518 = vmatprep.subr.mxu0 0.0
    %519 = vmatpush1.msra.mxu0 0.0
    %520 = vmatprep.subr.mxu0 0.0
    %521 = vmatpush1.msra.mxu0 0.0
    %522 = vmatprep.subr.mxu0 0.0
    %523 = vmatpush1.msra.mxu0 0.0
    %524 = vmatprep.subr.mxu0 0.0
    %525 = vmatpush1.msra.mxu0 0.0
    %526 = vmatprep.subr.mxu0 0.0
    %527 = vmatpush1.msra.mxu0 0.0
    %528 = vmatprep.subr.mxu0 0.0
    %529 = vmatpush1.msra.mxu0 0.0
    %530 = vmatprep.subr.mxu0 0.0
    %531 = vmatpush1.msra.mxu0 0.0
    %532 = vmatprep.subr.mxu0 0.0
    %533 = vmatpush1.msra.mxu0 0.0
    %534 = vmatprep.subr.mxu0 0.0
    %535 = vmatpush1.msra.mxu0 0.0
    %536 = vmatprep.subr.mxu0 0.0
    %537 = vmatpush1.msra.mxu0 0.0
    %538 = vmatprep.subr.mxu0 0.0
    %539 = vmatpush1.msra.mxu0 0.0
    %540 = vmatprep.subr.mxu0 0.0
    %541 = vmatpush1.msra.mxu0 0.0
    %542 = vmatprep.subr.mxu0 0.0
    %543 = vmatpush1.msra.mxu0 0.0
    %544 = vmatprep.subr.mxu0 0.0
    %545 = vmatpush1.msra.mxu0 0.0
    %546 = vmatprep.subr.mxu0 0.0
    %547 = vmatpush1.msra.mxu0 0.0
    %548 = vmatprep.mubr.f32.mxu0 0.0
    %549 = vmatmul.mubr.f32.gmra.mrb[0].mxu0 %v402
    %v550 = vpop.f32.mrb[0].mxu0
    %v551 = vadd.f32 %v387, %v550
    %v552 = vpop.f32.mrb[0].mxu0
    %v553 = vadd.f32 %v391, %v552
    %554 = vdwg.mxu0
    %556 = vset.pattern.permute.xlu0 0
    %557 = vperm.xlu0 %556, %v48
    %v558 = vpop.permute.xlu0 %557
    %v561 = vlaneseq
    %v562 = vshrl.u32 %v561, 7
    %v563 = vsub.s32 0, %v562
    %v564 = vrot.slane %v51, %v563
    %v565 = vlaneseq
    %v566 = vshrl.u32 %v565, 7
    %v567 = vsub.s32 2, %v566
    %v568 = vrot.slane %v51, %v567
    %v569 = vlaneseq
    %v570 = vshrl.u32 %v569, 7
    %v571 = vsub.s32 4, %v570
    %v572 = vrot.slane %v51, %v571
    %v573 = vlaneseq
    %v574 = vshrl.u32 %v573, 7
    %v575 = vsub.s32 6, %v574
    %v576 = vrot.slane %v51, %v575
    %v581 = vlaneseq
    %v582 = vshrl.u32 %v581, 7
    %v583 = vsub.s32 0, %v582
    %v584 = vrot.slane %v564, %v583
    %v585 = vlaneseq
    %v586 = vshrl.u32 %v585, 7
    %v587 = vsub.s32 0, %v586
    %v588 = vrot.slane %v568, %v587
    %v589 = vlaneseq
    %v590 = vshrl.u32 %v589, 7
    %v591 = vsub.s32 0, %v590
    %v592 = vrot.slane %v572, %v591
    %v593 = vlaneseq
    %v594 = vshrl.u32 %v593, 7
    %v595 = vsub.s32 0, %v594
    %v596 = vrot.slane %v576, %v595
    %v597 = vmul.f32 %v558, %v584
    %v598 = vmul.f32 %v558, %v588
    %v599 = vmul.f32 %v558, %v592
    %v600 = vmul.f32 %v558, %v596
    %v601 = vadd.f32 %v480, %v597
    %v602 = vadd.f32 %v482, %v598
    %v603 = vadd.f32 %v551, %v599
    %v604 = vadd.f32 %v553, %v600
    %605 = vset.pattern.permute.xlu0 1
    %606 = vperm.xlu0 %605, %v48
    %v607 = vpop.permute.xlu0 %606
    %v609 = vlaneseq
    %v610 = vshrl.u32 %v609, 7
    %v611 = vsub.s32 1, %v610
    %v612 = vrot.slane %v51, %v611
    %v613 = vlaneseq
    %v614 = vshrl.u32 %v613, 7
    %v615 = vsub.s32 3, %v614
    %v616 = vrot.slane %v51, %v615
    %v617 = vlaneseq
    %v618 = vshrl.u32 %v617, 7
    %v619 = vsub.s32 5, %v618
    %v620 = vrot.slane %v51, %v619
    %v621 = vlaneseq
    %v622 = vshrl.u32 %v621, 7
    %v623 = vsub.s32 7, %v622
    %v624 = vrot.slane %v51, %v623
    %v629 = vlaneseq
    %v630 = vshrl.u32 %v629, 7
    %v631 = vsub.s32 1, %v630
    %v632 = vrot.slane %v612, %v631
    %v633 = vlaneseq
    %v634 = vshrl.u32 %v633, 7
    %v635 = vsub.s32 1, %v634
    %v636 = vrot.slane %v616, %v635
    %v637 = vlaneseq
    %v638 = vshrl.u32 %v637, 7
    %v639 = vsub.s32 1, %v638
    %v640 = vrot.slane %v620, %v639
    %v641 = vlaneseq
    %v642 = vshrl.u32 %v641, 7
    %v643 = vsub.s32 1, %v642
    %v644 = vrot.slane %v624, %v643
    %v645 = vmul.f32 %v607, %v632
    %v646 = vmul.f32 %v607, %v636
    %v647 = vmul.f32 %v607, %v640
    %v648 = vmul.f32 %v607, %v644
    %v649 = vadd.f32 %v601, %v645
    %v650 = vadd.f32 %v602, %v646
    %v651 = vadd.f32 %v603, %v647
    %v652 = vadd.f32 %v604, %v648
    %v653 = vtanh.pop %v649
    %v654 = vtanh.pop %v650
    %v655 = vtanh.pop %v651
    %v656 = vtanh.pop %v652
    %v658 = vlaneseq
    %v659 = vshrl.u32 %v658, 7
    %v660 = vsub.s32 0, %v659
    %v661 = vrot.slane %v309, %v660
    %v662 = vlaneseq
    %v663 = vshrl.u32 %v662, 7
    %v664 = vsub.s32 1, %v663
    %v665 = vrot.slane %v309, %v664
    %v666 = vlaneseq
    %v667 = vshrl.u32 %v666, 7
    %v668 = vsub.s32 2, %v667
    %v669 = vrot.slane %v309, %v668
    %v670 = vlaneseq
    %v671 = vshrl.u32 %v670, 7
    %v672 = vsub.s32 3, %v671
    %v673 = vrot.slane %v309, %v672
    %678 = vmatprep.subr.mxu0 %v54
    %679 = vmatpush1.msra.mxu0 %v53
    %680 = vmatprep.subr.mxu0 %v58
    %681 = vmatpush1.msra.mxu0 %v57
    %682 = vmatprep.subr.mxu0 %v62
    %683 = vmatpush1.msra.mxu0 %v61
    %684 = vmatprep.subr.mxu0 %v66
    %685 = vmatpush1.msra.mxu0 %v65
    %686 = vmatprep.subr.mxu0 %v70
    %687 = vmatpush1.msra.mxu0 %v69
    %688 = vmatprep.subr.mxu0 %v74
    %689 = vmatpush1.msra.mxu0 %v73
    %690 = vmatprep.subr.mxu0 %v78
    %691 = vmatpush1.msra.mxu0 %v77
    %692 = vmatprep.subr.mxu0 %v82
    %693 = vmatpush1.msra.mxu0 %v81
    %694 = vmatprep.subr.mxu0 %v86
    %695 = vmatpush1.msra.mxu0 %v85
    %696 = vmatprep.subr.mxu0 %v90
    %697 = vmatpush1.msra.mxu0 %v89
    %698 = vmatprep.subr.mxu0 %v94
    %699 = vmatpush1.msra.mxu0 %v93
    %700 = vmatprep.subr.mxu0 %v98
    %701 = vmatpush1.msra.mxu0 %v97
    %702 = vmatprep.subr.mxu0 %v102
    %703 = vmatpush1.msra.mxu0 %v101
    %704 = vmatprep.subr.mxu0 %v106
    %705 = vmatpush1.msra.mxu0 %v105
    %706 = vmatprep.subr.mxu0 %v110
    %707 = vmatpush1.msra.mxu0 %v109
    %708 = vmatprep.subr.mxu0 %v114
    %709 = vmatpush1.msra.mxu0 %v113
    %710 = vmatprep.subr.mxu0 %v118
    %711 = vmatpush1.msra.mxu0 %v117
    %712 = vmatprep.subr.mxu0 %v122
    %713 = vmatpush1.msra.mxu0 %v121
    %714 = vmatprep.subr.mxu0 %v126
    %715 = vmatpush1.msra.mxu0 %v125
    %716 = vmatprep.subr.mxu0 %v130
    %717 = vmatpush1.msra.mxu0 %v129
    %718 = vmatprep.subr.mxu0 %v134
    %719 = vmatpush1.msra.mxu0 %v133
    %720 = vmatprep.subr.mxu0 %v138
    %721 = vmatpush1.msra.mxu0 %v137
    %722 = vmatprep.subr.mxu0 %v142
    %723 = vmatpush1.msra.mxu0 %v141
    %724 = vmatprep.subr.mxu0 %v146
    %725 = vmatpush1.msra.mxu0 %v145
    %726 = vmatprep.subr.mxu0 %v150
    %727 = vmatpush1.msra.mxu0 %v149
    %728 = vmatprep.subr.mxu0 %v154
    %729 = vmatpush1.msra.mxu0 %v153
    %730 = vmatprep.subr.mxu0 %v158
    %731 = vmatpush1.msra.mxu0 %v157
    %732 = vmatprep.subr.mxu0 %v162
    %733 = vmatpush1.msra.mxu0 %v161
    %734 = vmatprep.subr.mxu0 %v166
    %735 = vmatpush1.msra.mxu0 %v165
    %736 = vmatprep.subr.mxu0 %v170
    %737 = vmatpush1.msra.mxu0 %v169
    %738 = vmatprep.subr.mxu0 %v174
    %739 = vmatpush1.msra.mxu0 %v173
    %740 = vmatprep.subr.mxu0 %v178
    %741 = vmatpush1.msra.mxu0 %v177
    %742 = vmatprep.mubr.f32.mxu0 %v654
    %743 = vmatmul.mubr.f32.gmra.mrb[0].mxu0 %v653
    %v744 = vpop.f32.mrb[0].mxu0
    %v745 = vadd.f32 %v661, %v744
    %v746 = vpop.f32.mrb[0].mxu0
    %v747 = vadd.f32 %v665, %v746
    %748 = vdwg.mxu0
    %749 = vmatprep.subr.mxu0 %v182
    %750 = vmatpush1.msra.mxu0 %v181
    %751 = vmatprep.subr.mxu0 %v186
    %752 = vmatpush1.msra.mxu0 %v185
    %753 = vmatprep.subr.mxu0 %v190
    %754 = vmatpush1.msra.mxu0 %v189
    %755 = vmatprep.subr.mxu0 %v194
    %756 = vmatpush1.msra.mxu0 %v193
    %757 = vmatprep.subr.mxu0 %v198
    %758 = vmatpush1.msra.mxu0 %v197
    %759 = vmatprep.subr.mxu0 %v202
    %760 = vmatpush1.msra.mxu0 %v201
    %761 = vmatprep.subr.mxu0 %v206
    %762 = vmatpush1.msra.mxu0 %v205
    %763 = vmatprep.subr.mxu0 %v210
    %764 = vmatpush1.msra.mxu0 %v209
    %765 = vmatprep.subr.mxu0 %v214
    %766 = vmatpush1.msra.mxu0 %v213
    %767 = vmatprep.subr.mxu0 %v218
    %768 = vmatpush1.msra.mxu0 %v217
    %769 = vmatprep.subr.mxu0 %v222
    %770 = vmatpush1.msra.mxu0 %v221
    %771 = vmatprep.subr.mxu0 %v226
    %772 = vmatpush1.msra.mxu0 %v225
    %773 = vmatprep.subr.mxu0 %v230
    %774 = vmatpush1.msra.mxu0 %v229
    %775 = vmatprep.subr.mxu0 %v234
    %776 = vmatpush1.msra.mxu0 %v233
    %777 = vmatprep.subr.mxu0 %v238
    %778 = vmatpush1.msra.mxu0 %v237
    %779 = vmatprep.subr.mxu0 %v242
    %780 = vmatpush1.msra.mxu0 %v241
    %781 = vmatprep.subr.mxu0 %v246
    %782 = vmatpush1.msra.mxu0 %v245
    %783 = vmatprep.subr.mxu0 %v250
    %784 = vmatpush1.msra.mxu0 %v249
    %785 = vmatprep.subr.mxu0 %v254
    %786 = vmatpush1.msra.mxu0 %v253
    %787 = vmatprep.subr.mxu0 %v258
    %788 = vmatpush1.msra.mxu0 %v257
    %789 = vmatprep.subr.mxu0 %v262
    %790 = vmatpush1.msra.mxu0 %v261
    %791 = vmatprep.subr.mxu0 %v266
    %792 = vmatpush1.msra.mxu0 %v265
    %793 = vmatprep.subr.mxu0 %v270
    %794 = vmatpush1.msra.mxu0 %v269
    %795 = vmatprep.subr.mxu0 %v274
    %796 = vmatpush1.msra.mxu0 %v273
    %797 = vmatprep.subr.mxu0 %v278
    %798 = vmatpush1.msra.mxu0 %v277
    %799 = vmatprep.subr.mxu0 %v282
    %800 = vmatpush1.msra.mxu0 %v281
    %801 = vmatprep.subr.mxu0 %v286
    %802 = vmatpush1.msra.mxu0 %v285
    %803 = vmatprep.subr.mxu0 %v290
    %804 = vmatpush1.msra.mxu0 %v289
    %805 = vmatprep.subr.mxu0 %v294
    %806 = vmatpush1.msra.mxu0 %v293
    %807 = vmatprep.subr.mxu0 %v298
    %808 = vmatpush1.msra.mxu0 %v297
    %809 = vmatprep.subr.mxu0 %v302
    %810 = vmatpush1.msra.mxu0 %v301
    %811 = vmatprep.subr.mxu0 %v306
    %812 = vmatpush1.msra.mxu0 %v305
    %813 = vmatprep.mubr.f32.mxu0 %v656
    %814 = vmatmul.mubr.f32.gmra.mrb[0].mxu0 %v655
    %v815 = vpop.f32.mrb[0].mxu0
    %v816 = vadd.f32 %v745, %v815
    %v817 = vpop.f32.mrb[0].mxu0
    %v818 = vadd.f32 %v747, %v817
    %819 = vdwg.mxu0
    %820 = vmatprep.subr.mxu0 %v56
    %821 = vmatpush1.msra.mxu0 %v55
    %822 = vmatprep.subr.mxu0 %v60
    %823 = vmatpush1.msra.mxu0 %v59
    %824 = vmatprep.subr.mxu0 %v64
    %825 = vmatpush1.msra.mxu0 %v63
    %826 = vmatprep.subr.mxu0 %v68
    %827 = vmatpush1.msra.mxu0 %v67
    %828 = vmatprep.subr.mxu0 %v72
    %829 = vmatpush1.msra.mxu0 %v71
    %830 = vmatprep.subr.mxu0 %v76
    %831 = vmatpush1.msra.mxu0 %v75
    %832 = vmatprep.subr.mxu0 %v80
    %833 = vmatpush1.msra.mxu0 %v79
    %834 = vmatprep.subr.mxu0 %v84
    %835 = vmatpush1.msra.mxu0 %v83
    %836 = vmatprep.subr.mxu0 %v88
    %837 = vmatpush1.msra.mxu0 %v87
    %838 = vmatprep.subr.mxu0 %v92
    %839 = vmatpush1.msra.mxu0 %v91
    %840 = vmatprep.subr.mxu0 %v96
    %841 = vmatpush1.msra.mxu0 %v95
    %842 = vmatprep.subr.mxu0 %v100
    %843 = vmatpush1.msra.mxu0 %v99
    %844 = vmatprep.subr.mxu0 %v104
    %845 = vmatpush1.msra.mxu0 %v103
    %846 = vmatprep.subr.mxu0 %v108
    %847 = vmatpush1.msra.mxu0 %v107
    %848 = vmatprep.subr.mxu0 %v112
    %849 = vmatpush1.msra.mxu0 %v111
    %850 = vmatprep.subr.mxu0 %v116
    %851 = vmatpush1.msra.mxu0 %v115
    %852 = vmatprep.subr.mxu0 %v120
    %853 = vmatpush1.msra.mxu0 %v119
    %854 = vmatprep.subr.mxu0 %v124
    %855 = vmatpush1.msra.mxu0 %v123
    %856 = vmatprep.subr.mxu0 %v128
    %857 = vmatpush1.msra.mxu0 %v127
    %858 = vmatprep.subr.mxu0 %v132
    %859 = vmatpush1.msra.mxu0 %v131
    %860 = vmatprep.subr.mxu0 %v136
    %861 = vmatpush1.msra.mxu0 %v135
    %862 = vmatprep.subr.mxu0 %v140
    %863 = vmatpush1.msra.mxu0 %v139
    %864 = vmatprep.subr.mxu0 %v144
    %865 = vmatpush1.msra.mxu0 %v143
    %866 = vmatprep.subr.mxu0 %v148
    %867 = vmatpush1.msra.mxu0 %v147
    %868 = vmatprep.subr.mxu0 %v152
    %869 = vmatpush1.msra.mxu0 %v151
    %870 = vmatprep.subr.mxu0 %v156
    %871 = vmatpush1.msra.mxu0 %v155
    %872 = vmatprep.subr.mxu0 %v160
    %873 = vmatpush1.msra.mxu0 %v159
    %874 = vmatprep.subr.mxu0 %v164
    %875 = vmatpush1.msra.mxu0 %v163
    %876 = vmatprep.subr.mxu0 %v168
    %877 = vmatpush1.msra.mxu0 %v167
    %878 = vmatprep.subr.mxu0 %v172
    %879 = vmatpush1.msra.mxu0 %v171
    %880 = vmatprep.subr.mxu0 %v176
    %881 = vmatpush1.msra.mxu0 %v175
    %882 = vmatprep.subr.mxu0 %v180
    %883 = vmatpush1.msra.mxu0 %v179
    %884 = vmatprep.mubr.f32.mxu0 %v654
    %885 = vmatmul.mubr.f32.gmra.mrb[0].mxu0 %v653
    %v886 = vpop.f32.mrb[0].mxu0
    %v887 = vadd.f32 %v669, %v886
    %v888 = vpop.f32.mrb[0].mxu0
    %v889 = vadd.f32 %v673, %v888
    %890 = vdwg.mxu0
    %891 = vmatprep.subr.mxu0 %v184
    %892 = vmatpush1.msra.mxu0 %v183
    %893 = vmatprep.subr.mxu0 %v188
    %894 = vmatpush1.msra.mxu0 %v187
    %895 = vmatprep.subr.mxu0 %v192
    %896 = vmatpush1.msra.mxu0 %v191
    %897 = vmatprep.subr.mxu0 %v196
    %898 = vmatpush1.msra.mxu0 %v195
    %899 = vmatprep.subr.mxu0 %v200
    %900 = vmatpush1.msra.mxu0 %v199
    %901 = vmatprep.subr.mxu0 %v204
    %902 = vmatpush1.msra.mxu0 %v203
    %903 = vmatprep.subr.mxu0 %v208
    %904 = vmatpush1.msra.mxu0 %v207
    %905 = vmatprep.subr.mxu0 %v212
    %906 = vmatpush1.msra.mxu0 %v211
    %907 = vmatprep.subr.mxu0 %v216
    %908 = vmatpush1.msra.mxu0 %v215
    %909 = vmatprep.subr.mxu0 %v220
    %910 = vmatpush1.msra.mxu0 %v219
    %911 = vmatprep.subr.mxu0 %v224
    %912 = vmatpush1.msra.mxu0 %v223
    %913 = vmatprep.subr.mxu0 %v228
    %914 = vmatpush1.msra.mxu0 %v227
    %915 = vmatprep.subr.mxu0 %v232
    %916 = vmatpush1.msra.mxu0 %v231
    %917 = vmatprep.subr.mxu0 %v236
    %918 = vmatpush1.msra.mxu0 %v235
    %919 = vmatprep.subr.mxu0 %v240
    %920 = vmatpush1.msra.mxu0 %v239
    %921 = vmatprep.subr.mxu0 %v244
    %922 = vmatpush1.msra.mxu0 %v243
    %923 = vmatprep.subr.mxu0 %v248
    %924 = vmatpush1.msra.mxu0 %v247
    %925 = vmatprep.subr.mxu0 %v252
    %926 = vmatpush1.msra.mxu0 %v251
    %927 = vmatprep.subr.mxu0 %v256
    %928 = vmatpush1.msra.mxu0 %v255
    %929 = vmatprep.subr.mxu0 %v260
    %930 = vmatpush1.msra.mxu0 %v259
    %931 = vmatprep.subr.mxu0 %v264
    %932 = vmatpush1.msra.mxu0 %v263
    %933 = vmatprep.subr.mxu0 %v268
    %934 = vmatpush1.msra.mxu0 %v267
    %935 = vmatprep.subr.mxu0 %v272
    %936 = vmatpush1.msra.mxu0 %v271
    %937 = vmatprep.subr.mxu0 %v276
    %938 = vmatpush1.msra.mxu0 %v275
    %939 = vmatprep.subr.mxu0 %v280
    %940 = vmatpush1.msra.mxu0 %v279
    %941 = vmatprep.subr.mxu0 %v284
    %942 = vmatpush1.msra.mxu0 %v283
    %943 = vmatprep.subr.mxu0 %v288
    %944 = vmatpush1.msra.mxu0 %v287
    %945 = vmatprep.subr.mxu0 %v292
    %946 = vmatpush1.msra.mxu0 %v291
    %947 = vmatprep.subr.mxu0 %v296
    %948 = vmatpush1.msra.mxu0 %v295
    %949 = vmatprep.subr.mxu0 %v300
    %950 = vmatpush1.msra.mxu0 %v299
    %951 = vmatprep.subr.mxu0 %v304
    %952 = vmatpush1.msra.mxu0 %v303
    %953 = vmatprep.subr.mxu0 %v308
    %954 = vmatpush1.msra.mxu0 %v307
    %955 = vmatprep.mubr.f32.mxu0 %v656
    %956 = vmatmul.mubr.f32.gmra.mrb[0].mxu0 %v655
    %v957 = vpop.f32.mrb[0].mxu0
    %v958 = vadd.f32 %v887, %v957
    %v959 = vpop.f32.mrb[0].mxu0
    %v960 = vadd.f32 %v889, %v959
    %961 = vdwg.mxu0
    %v962 = vtanh.pop %v816
    %v963 = vtanh.pop %v818
    %v964 = vtanh.pop %v958
    %v965 = vtanh.pop %v960
    %v967 = vlaneseq
    %v968 = vshrl.u32 %v967, 7
    %v969 = vsub.s32 0, %v968
    %v970 = vrot.slane %v374, %v969
    %972 = vmatprep.subr.mxu0 0.0
    %973 = vmatpush1.msra.mxu0 %v310
    %974 = vmatprep.subr.mxu0 0.0
    %975 = vmatpush1.msra.mxu0 %v311
    %976 = vmatprep.subr.mxu0 0.0
    %977 = vmatpush1.msra.mxu0 %v312
    %978 = vmatprep.subr.mxu0 0.0
    %979 = vmatpush1.msra.mxu0 %v313
    %980 = vmatprep.subr.mxu0 0.0
    %981 = vmatpush1.msra.mxu0 %v314
    %982 = vmatprep.subr.mxu0 0.0
    %983 = vmatpush1.msra.mxu0 %v315
    %984 = vmatprep.subr.mxu0 0.0
    %985 = vmatpush1.msra.mxu0 %v316
    %986 = vmatprep.subr.mxu0 0.0
    %987 = vmatpush1.msra.mxu0 %v317
    %988 = vmatprep.subr.mxu0 0.0
    %989 = vmatpush1.msra.mxu0 %v318
    %990 = vmatprep.subr.mxu0 0.0
    %991 = vmatpush1.msra.mxu0 %v319
    %992 = vmatprep.subr.mxu0 0.0
    %993 = vmatpush1.msra.mxu0 %v320
    %994 = vmatprep.subr.mxu0 0.0
    %995 = vmatpush1.msra.mxu0 %v321
    %996 = vmatprep.subr.mxu0 0.0
    %997 = vmatpush1.msra.mxu0 %v322
    %998 = vmatprep.subr.mxu0 0.0
    %999 = vmatpush1.msra.mxu0 %v323
    %1000 = vmatprep.subr.mxu0 0.0
    %1001 = vmatpush1.msra.mxu0 %v324
    %1002 = vmatprep.subr.mxu0 0.0
    %1003 = vmatpush1.msra.mxu0 %v325
    %1004 = vmatprep.subr.mxu0 0.0
    %1005 = vmatpush1.msra.mxu0 %v326
    %1006 = vmatprep.subr.mxu0 0.0
    %1007 = vmatpush1.msra.mxu0 %v327
    %1008 = vmatprep.subr.mxu0 0.0
    %1009 = vmatpush1.msra.mxu0 %v328
    %1010 = vmatprep.subr.mxu0 0.0
    %1011 = vmatpush1.msra.mxu0 %v329
    %1012 = vmatprep.subr.mxu0 0.0
    %1013 = vmatpush1.msra.mxu0 %v330
    %1014 = vmatprep.subr.mxu0 0.0
    %1015 = vmatpush1.msra.mxu0 %v331
    %1016 = vmatprep.subr.mxu0 0.0
    %1017 = vmatpush1.msra.mxu0 %v332
    %1018 = vmatprep.subr.mxu0 0.0
    %1019 = vmatpush1.msra.mxu0 %v333
    %1020 = vmatprep.subr.mxu0 0.0
    %1021 = vmatpush1.msra.mxu0 %v334
    %1022 = vmatprep.subr.mxu0 0.0
    %1023 = vmatpush1.msra.mxu0 %v335
    %1024 = vmatprep.subr.mxu0 0.0
    %1025 = vmatpush1.msra.mxu0 %v336
    %1026 = vmatprep.subr.mxu0 0.0
    %1027 = vmatpush1.msra.mxu0 %v337
    %1028 = vmatprep.subr.mxu0 0.0
    %1029 = vmatpush1.msra.mxu0 %v338
    %1030 = vmatprep.subr.mxu0 0.0
    %1031 = vmatpush1.msra.mxu0 %v339
    %1032 = vmatprep.subr.mxu0 0.0
    %1033 = vmatpush1.msra.mxu0 %v340
    %1034 = vmatprep.subr.mxu0 0.0
    %1035 = vmatpush1.msra.mxu0 %v341
    %1036 = vmatprep.mubr.f32.mxu0 %v963
    %1037 = vmatmul.mubr.f32.gmra.mrb[0].mxu0 %v962
    %v1038 = vpop.f32.mrb[0].mxu0
    %v1039 = vadd.f32 %v970, %v1038
    %v1040 = vpop.f32.mrb[0].mxu0
    %1041 = vdwg.mxu0
    %1042 = vmatprep.subr.mxu0 0.0
    %1043 = vmatpush1.msra.mxu0 %v342
    %1044 = vmatprep.subr.mxu0 0.0
    %1045 = vmatpush1.msra.mxu0 %v343
    %1046 = vmatprep.subr.mxu0 0.0
    %1047 = vmatpush1.msra.mxu0 %v344
    %1048 = vmatprep.subr.mxu0 0.0
    %1049 = vmatpush1.msra.mxu0 %v345
    %1050 = vmatprep.subr.mxu0 0.0
    %1051 = vmatpush1.msra.mxu0 %v346
    %1052 = vmatprep.subr.mxu0 0.0
    %1053 = vmatpush1.msra.mxu0 %v347
    %1054 = vmatprep.subr.mxu0 0.0
    %1055 = vmatpush1.msra.mxu0 %v348
    %1056 = vmatprep.subr.mxu0 0.0
    %1057 = vmatpush1.msra.mxu0 %v349
    %1058 = vmatprep.subr.mxu0 0.0
    %1059 = vmatpush1.msra.mxu0 %v350
    %1060 = vmatprep.subr.mxu0 0.0
    %1061 = vmatpush1.msra.mxu0 %v351
    %1062 = vmatprep.subr.mxu0 0.0
    %1063 = vmatpush1.msra.mxu0 %v352
    %1064 = vmatprep.subr.mxu0 0.0
    %1065 = vmatpush1.msra.mxu0 %v353
    %1066 = vmatprep.subr.mxu0 0.0
    %1067 = vmatpush1.msra.mxu0 %v354
    %1068 = vmatprep.subr.mxu0 0.0
    %1069 = vmatpush1.msra.mxu0 %v355
    %1070 = vmatprep.subr.mxu0 0.0
    %1071 = vmatpush1.msra.mxu0 %v356
    %1072 = vmatprep.subr.mxu0 0.0
    %1073 = vmatpush1.msra.mxu0 %v357
    %1074 = vmatprep.subr.mxu0 0.0
    %1075 = vmatpush1.msra.mxu0 %v358
    %1076 = vmatprep.subr.mxu0 0.0
    %1077 = vmatpush1.msra.mxu0 %v359
    %1078 = vmatprep.subr.mxu0 0.0
    %1079 = vmatpush1.msra.mxu0 %v360
    %1080 = vmatprep.subr.mxu0 0.0
    %1081 = vmatpush1.msra.mxu0 %v361
    %1082 = vmatprep.subr.mxu0 0.0
    %1083 = vmatpush1.msra.mxu0 %v362
    %1084 = vmatprep.subr.mxu0 0.0
    %1085 = vmatpush1.msra.mxu0 %v363
    %1086 = vmatprep.subr.mxu0 0.0
    %1087 = vmatpush1.msra.mxu0 %v364
    %1088 = vmatprep.subr.mxu0 0.0
    %1089 = vmatpush1.msra.mxu0 %v365
    %1090 = vmatprep.subr.mxu0 0.0
    %1091 = vmatpush1.msra.mxu0 %v366
    %1092 = vmatprep.subr.mxu0 0.0
    %1093 = vmatpush1.msra.mxu0 %v367
    %1094 = vmatprep.subr.mxu0 0.0
    %1095 = vmatpush1.msra.mxu0 %v368
    %1096 = vmatprep.subr.mxu0 0.0
    %1097 = vmatpush1.msra.mxu0 %v369
    %1098 = vmatprep.subr.mxu0 0.0
    %1099 = vmatpush1.msra.mxu0 %v370
    %1100 = vmatprep.subr.mxu0 0.0
    %1101 = vmatpush1.msra.mxu0 %v371
    %1102 = vmatprep.subr.mxu0 0.0
    %1103 = vmatpush1.msra.mxu0 %v372
    %1104 = vmatprep.subr.mxu0 0.0
    %1105 = vmatpush1.msra.mxu0 %v373
    %1106 = vmatprep.mubr.f32.mxu0 %v965
    %1107 = vmatmul.mubr.f32.gmra.mrb[0].mxu0 %v964
    %v1108 = vpop.f32.mrb[0].mxu0
    %v1109 = vadd.f32 %v1039, %v1108
    %v1110 = vpop.f32.mrb[0].mxu0
    %1111 = vdwg.mxu0
    %1112 = vst [vmem:[#allocation5] sm:$0xff] %v1109
    // Predicated region
    $region42: #{odefunc_forward.1} parent=1 // pred_check
      _
    $region43: #{odefunc_forward.1} parent=1 // pred_check_branch
      %1114 = sbr.rel (0) target = $region45
    $region44: #{odefunc_forward.1} parent=1 // pred_region
      %s1116 = ssub.s32 128, 128
      %1117 = vsyncadd [#allocation4], %s1116
      %s1119 = sshll.u32 [#allocation5], 4
      %s1120 = int_to_ptr.vmem [resolvable:$true] %s1119
      %1122 = dma.vmem_to_hbm [thread:$0]  %s1120, 128, %s9, [#allocation4]
    $region45: #{odefunc_forward.1} parent=1 // pred_fallthru
      _
    // Predicated region
    $region46: #{odefunc_forward.1} parent=1 // pred_check
      _
    $region47: #{odefunc_forward.1} parent=1 // pred_check_branch
      %1124 = sbr.rel (0) target = $region49
    $region48: #{odefunc_forward.1} parent=1 // pred_region
      %1125 = dma.done [#allocation4], 128
    $region49: #{odefunc_forward.1} parent=1 // pred_fallthru
      _
    %1126 = vsyncpa [#allocation3], 1
    %1127 = vsyncpa [#allocation4], 1

</llo_original>
